<compile_context>
chip_gen: v7x
topology: tpu7x:2x2x1
jax: 0.10.0
libtpu: 0.0.40
codegen_flags: <defaults>
</compile_context>

<pallas_src>
import functools

import jax
import jax.numpy as jnp
from jax.experimental import pallas as pl
from jax.experimental.pallas import tpu as pltpu


def _label_smooth_ce_kernel(pred_ref, label_ref, out_ref, *, smoothing,
                            n_rows, tile_rows):
    """Per-tile partial sum of label-smoothing CE rows.

    loss_row = -sum_c log_softmax(x)_c * w_c,  w_c = s/C + (1-s)*[c == label]
             = log(sum_c exp(x_c - m)) - sum_c (x_c - m) * w_c   (sum_c w_c = 1)
    """
    i = pl.program_id(0)
    x = pred_ref[...].astype(jnp.float32)             # (TN, C) logits
    lbl = label_ref[...]                               # (TN, 1) int32
    tn, c = x.shape

    # Stable log-sum-exp pieces (row-wise).  exp -> EUP, reductions -> XLU;
    # both hide under the tile DMA on this HBM-bound kernel.
    m = jnp.max(x, axis=1, keepdims=True)                               # (TN,1)
    shifted = x - m                                                     # (TN,C)
    log_denom = jnp.log(jnp.sum(jnp.exp(shifted), axis=1, keepdims=True))

    # Single fused weighted reduction over classes (replaces separate
    # label-gather reduce + sum(shifted) reduce).
    classes = jax.lax.broadcasted_iota(jnp.int32, (tn, c), 1)
    base = smoothing / c
    w = jnp.where(classes == lbl, (1.0 - smoothing) + base, base)       # (TN,C)
    weighted = jnp.sum(shifted * w, axis=1, keepdims=True)              # (TN,1)

    per_row = log_denom - weighted                                      # (TN,1)

    # Partial last tile: rows past the true batch size contribute 0.  Only the
    # per-row result needs masking (row-wise reductions keep any padded-row
    # garbage confined to its own row), so no full-width logits mask.
    rows = jax.lax.broadcasted_iota(jnp.int32, (tn, 1), 0)
    valid = (i * tile_rows + rows) < n_rows
    per_row = jnp.where(valid, per_row, 0.0)

    # Lane-dense (1, 8, 128) output block per grid step (keeps the out spec
    # (8,128)-legal and parallel-safe); the wrapper reads element [.., 0, 0].
    out_ref[...] = jnp.full(out_ref.shape, jnp.sum(per_row), jnp.float32)


def _vmem_capacity_bytes():
    try:
        cap = getattr(pltpu.get_tpu_info(), "vmem_capacity_bytes", None)
        if cap:
            return int(cap)
    except Exception:
        pass
    return 128 * 1024 * 1024


def _pick_tile_rows(n, c, dtype, vmem_capacity):
    itemsize = jnp.dtype(dtype).itemsize
    # Sublane packing: 8 rows for 32-bit, 16 for bf16, 32 for int8/fp8.
    sublane = max(8, 32 // itemsize)

    # Per-tile logits byte budget.  v7x: 64 MiB VMEM/TC, so keep the
    # double-buffered input (2x tile) plus a few tile-sized f32 intermediates
    # comfortably inside the limit.  v5e/v6e: 128 MiB VMEM, go bigger.
    if vmem_capacity <= 64 * 1024 * 1024:
        target_bytes = 6 * 1024 * 1024
    else:
        target_bytes = 16 * 1024 * 1024

    tn = target_bytes // max(1, c * itemsize)
    tn = max(sublane, (tn // sublane) * sublane)
    if n >= sublane:
        # Keep the block no larger than the sublane-aligned batch (the last
        # tile may still be partial; the in-kernel mask handles it).
        tn = min(tn, (n // sublane) * sublane)

    # Guarantee >= 2 grid steps when the batch allows, so the "parallel" axis
    # can shard across both TensorCores on v7x.  Harmless extra step on 1-TC
    # chips (per-step overhead ~0.35 us).
    if n >= 2 * sublane and tn >= n:
        half = (n + 1) // 2
        tn = max(sublane, ((half + sublane - 1) // sublane) * sublane)
    return tn


def label_smooth_ce_loss(pred, label, smoothing=0.1):
    """pred: (N, C) float logits, label: (N,) int. Returns scalar f32 loss."""
    n, c = pred.shape
    label2d = label.astype(jnp.int32).reshape(n, 1)
    itemsize = jnp.dtype(pred.dtype).itemsize

    vmem_capacity = _vmem_capacity_bytes()
    tn = _pick_tile_rows(n, c, pred.dtype, vmem_capacity)
    num_tiles = pl.cdiv(n, tn)
    vmem_limit = (48 if vmem_capacity <= 64 * 1024 * 1024 else 100) * 1024 * 1024

    kernel = functools.partial(
        _label_smooth_ce_kernel,
        smoothing=float(smoothing), n_rows=n, tile_rows=tn)

    cost = pl.CostEstimate(
        flops=6 * n * c,
        transcendentals=n * c,
        bytes_accessed=n * c * itemsize + n * 4 + num_tiles * 8 * 128 * 4)

    partials = pl.pallas_call(
        kernel,
        grid=(num_tiles,),
        in_specs=[
            pl.BlockSpec((tn, c), lambda i: (i, 0)),   # logits tile (pipelined)
            pl.BlockSpec((tn, 1), lambda i: (i, 0)),   # labels tile
        ],
        out_specs=pl.BlockSpec((1, 8, 128), lambda i: (i, 0, 0)),
        out_shape=jax.ShapeDtypeStruct((num_tiles, 8, 128), jnp.float32),
        compiler_params=pltpu.CompilerParams(
            dimension_semantics=("parallel",),
            vmem_limit_bytes=vmem_limit),
        cost_estimate=cost,
    )(pred, label2d)

    return jnp.sum(partials[:, 0, 0]) / n


def _reference(pred, label, smoothing=0.1):
    # Mirrors the PyTorch forward exactly.
    sm = jax.nn.softmax(pred, axis=1)
    oh = jax.nn.one_hot(label, pred.shape[1], dtype=jnp.float32)
    smoothed = (1.0 - smoothing) * oh + smoothing / pred.shape[1]
    return jnp.mean(jnp.sum(-jnp.log(sm) * smoothed, axis=1))


if __name__ == "__main__":
    key = jax.random.PRNGKey(0)
    k1, k2, k3, k4, k5, k6 = jax.random.split(key, 6)

    # Case 1: batch fits exactly one tile.
    N1, C1 = 8, 32
    pred1 = jax.random.normal(k1, (N1, C1), dtype=jnp.float32)
    label1 = jax.random.randint(k2, (N1,), 0, C1, dtype=jnp.int32)
    loss1 = label_smooth_ce_loss(pred1, label1, smoothing=0.1)
    jax.block_until_ready(loss1)
    ref1 = _reference(pred1, label1, smoothing=0.1)
    assert jnp.allclose(loss1, ref1, rtol=1e-5, atol=1e-5), (loss1, ref1)

    # Case 2: batch NOT a multiple of the tile size (exercises last-tile mask).
    N2, C2 = 12, 160
    pred2 = jax.random.normal(k3, (N2, C2), dtype=jnp.float32)
    label2 = jax.random.randint(k4, (N2,), 0, C2, dtype=jnp.int32)
    loss2 = label_smooth_ce_loss(pred2, label2, smoothing=0.1)
    jax.block_until_ready(loss2)
    ref2 = _reference(pred2, label2, smoothing=0.1)
    assert jnp.allclose(loss2, ref2, rtol=1e-5, atol=1e-5), (loss2, ref2)

    # Case 3: bigger batch -> exercises the >=2-grid-step split (2 full tiles).
    N3, C3 = 64, 128
    pred3 = jax.random.normal(k5, (N3, C3), dtype=jnp.float32)
    label3 = jax.random.randint(k6, (N3,), 0, C3, dtype=jnp.int32)
    loss3 = label_smooth_ce_loss(pred3, label3, smoothing=0.1)
    jax.block_until_ready(loss3)
    ref3 = _reference(pred3, label3, smoothing=0.1)
    assert jnp.allclose(loss3, ref3, rtol=1e-5, atol=1e-5), (loss3, ref3)

    print("KERNEL_OK")
</pallas_src>

<mosaic_0001>
module attributes {stable_mosaic.version = 11 : i64} {
  func.func @_label_smooth_ce_kernel(%arg0: i32, %arg1: memref<8x32xf32, #tpu.memory_space<vmem>>, %arg2: memref<8x1xi32, #tpu.memory_space<vmem>>, %arg3: memref<1x8x128xf32, #tpu.memory_space<vmem>>) attributes {dimension_semantics = [#tpu.dimension_semantics<parallel>], iteration_bounds = array<i64: 1>, scalar_prefetch = 0 : i64, scratch_operands = 0 : i64, tpu.core_type = #tpu.core_type<tc>, window_params = [{transform_indices = @transform_0, window_bounds = array<i64: 8, 32>}, {transform_indices = @transform_1, window_bounds = array<i64: 8, 1>}, {transform_indices = @transform_2, window_bounds = array<i64: 1, 8, 128>}]} {
    %c0 = arith.constant 0 : index
    %c0_0 = arith.constant 0 : index
    %0 = vector.load %arg1[%c0, %c0_0] : memref<8x32xf32, #tpu.memory_space<vmem>>, vector<8x32xf32>
    %c0_1 = arith.constant 0 : index
    %c0_2 = arith.constant 0 : index
    %1 = vector.load %arg2[%c0_1, %c0_2] : memref<8x1xi32, #tpu.memory_space<vmem>>, vector<8x1xi32>
    %cst = arith.constant dense<0xFF800000> : vector<8xf32>
    %2 = vector.multi_reduction <maximumf>, %0, %cst [1] : vector<8x32xf32> to vector<8xf32>
    %3 = vector.shape_cast %2 : vector<8xf32> to vector<8x1xf32>
    %4 = vector.broadcast %3 : vector<8x1xf32> to vector<8x32xf32>
    %5 = arith.subf %0, %4 : vector<8x32xf32>
    %6 = math.exp %5 : vector<8x32xf32>
    %cst_3 = arith.constant dense<0.000000e+00> : vector<8xf32>
    %7 = vector.multi_reduction <add>, %6, %cst_3 [1] : vector<8x32xf32> to vector<8xf32>
    %8 = vector.shape_cast %7 : vector<8xf32> to vector<8x1xf32>
    %9 = math.log %8 : vector<8x1xf32>
    %10 = tpu.iota {dimensions = array<i32: 1>} : vector<8x32xi32>
    %11 = vector.broadcast %1 : vector<8x1xi32> to vector<8x32xi32>
    %12 = arith.cmpi eq, %10, %11 : vector<8x32xi32>
    %cst_4 = arith.constant 0.903124988 : f32
    %cst_5 = arith.constant 3.125000e-03 : f32
    %13 = vector.broadcast %cst_4 : f32 to vector<8x32xf32>
    %14 = vector.broadcast %cst_5 : f32 to vector<8x32xf32>
    %15 = arith.select %12, %13, %14 : vector<8x32xi1>, vector<8x32xf32>
    %16 = arith.mulf %5, %15 : vector<8x32xf32>
    %cst_6 = arith.constant dense<0.000000e+00> : vector<8xf32>
    %17 = vector.multi_reduction <add>, %16, %cst_6 [1] : vector<8x32xf32> to vector<8xf32>
    %18 = vector.shape_cast %17 : vector<8xf32> to vector<8x1xf32>
    %19 = arith.subf %9, %18 : vector<8x1xf32>
    %20 = tpu.iota {dimensions = array<i32: 0>} : vector<8x1xi32>
    %c8_i32 = arith.constant 8 : i32
    %21 = arith.muli %arg0, %c8_i32 : i32
    %22 = vector.broadcast %21 : i32 to vector<8x1xi32>
    %23 = arith.addi %22, %20 : vector<8x1xi32>
    %c8_i32_7 = arith.constant 8 : i32
    %24 = vector.broadcast %c8_i32_7 : i32 to vector<8x1xi32>
    %25 = arith.cmpi slt, %23, %24 : vector<8x1xi32>
    %cst_8 = arith.constant 0.000000e+00 : f32
    %26 = vector.broadcast %cst_8 : f32 to vector<8x1xf32>
    %27 = arith.select %25, %19, %26 : vector<8x1xi1>, vector<8x1xf32>
    %28 = vector.shape_cast %27 : vector<8x1xf32> to vector<1x8x1xf32>
    %cst_9 = arith.constant dense<0.000000e+00> : vector<1xf32>
    %29 = vector.multi_reduction <add>, %28, %cst_9 [1, 2] : vector<1x8x1xf32> to vector<1xf32>
    %30 = vector.shape_cast %29 : vector<1xf32> to vector<1x1x1xf32>
    %31 = vector.extract %30[0, 0, 0] : f32 from vector<1x1x1xf32>
    %32 = vector.broadcast %31 : f32 to vector<1x8x128xf32>
    %c0_10 = arith.constant 0 : index
    %c0_11 = arith.constant 0 : index
    %c0_12 = arith.constant 0 : index
    %33 = vector.load %arg3[%c0_10, %c0_11, %c0_12] : memref<1x8x128xf32, #tpu.memory_space<vmem>>, vector<1x8x128xf32>
    tpu.vector_store %arg3[%c0_10, %c0_11, %c0_12], %32 {strides = array<i32>} : memref<1x8x128xf32, #tpu.memory_space<vmem>>, vector<1x8x128xf32>,
    return
  }
  func.func @transform_0(%arg0: i32) -> (i32, i32) {
    %c0_i32 = arith.constant 0 : i32
    %c0_i32_0 = arith.constant 0 : i32
    return %arg0, %c0_i32 : i32, i32
  }
  func.func @transform_1(%arg0: i32) -> (i32, i32) {
    %c0_i32 = arith.constant 0 : i32
    %c0_i32_0 = arith.constant 0 : i32
    return %arg0, %c0_i32 : i32, i32
  }
  func.func @transform_2(%arg0: i32) -> (i32, i32, i32) {
    %c0_i32 = arith.constant 0 : i32
    %c0_i32_0 = arith.constant 0 : i32
    %c0_i32_1 = arith.constant 0 : i32
    return %arg0, %c0_i32, %c0_i32_0 : i32, i32, i32
  }
}

</mosaic_0001>

<llo_original>
// kernel: tpu_custom_call.1
$region0: #{tpu_custom_call.1}
  #allocation0 [shape = 'u32[]', space=smem, size = 0x4, offset = 0x4, fixed_abs, tag = 'smem constant byte address 0x4 - core index']
  #allocation1 [shape = 'u32[144,128]{1,0:T(1,128)}', space=vmem, size = 0x12000, scoped, tag = 'internal scratch']
  %s0 = inlined_call_operand.hbm [shape: f32[8,32], index: 0, kind: input, shape index: {}]
  %s1 = inlined_call_operand.hbm [shape: s32[8,1], index: 1, kind: input, shape index: {}]
  %s2 = inlined_call_operand.hbm [shape: f32[1,8,128], index: 2, kind: output, shape index: {}]
  %s3 = sld [smem:[#allocation0]]
  $region26: #{tpu_custom_call.1} parent=0
    _
  %s5 = ssub.s32 1, %s3
  %s6 = scalar_select 0, %s5, %s3
  $region1: #{tpu_custom_call.1} parent=0
    #allocation2 [shape = 'u8[4096]{0}', space=vmem, size = 0x1000, scoped, tag = 'input window, operand 0, single buffered']
    #allocation3 [shape = 's32[1]{0}', space=sflag, size = 0x4, scoped, tag = 'scoped memory for tpu_custom_call.1']
    #allocation4 [shape = 's32[1]{0}', space=sflag, size = 0x4, scoped, tag = 'scoped memory for tpu_custom_call.1']
    #allocation5 [shape = 'u8[4096]{0}', space=vmem, size = 0x1000, scoped, tag = 'input window, operand 1, single buffered']
    #allocation6 [shape = 's32[1]{0}', space=sflag, size = 0x4, scoped, tag = 'scoped memory for tpu_custom_call.1']
    #allocation7 [shape = 'u8[4096]{0}', space=vmem, size = 0x1000, scoped, tag = 'output window, operand 0, single buffered']
    %7 = vsyncpa [#allocation3], 0
    %8 = vsyncpa [#allocation6], 0
    %9 = vsyncpa [#allocation4], 0
    // Predicated region
    $region2: #{tpu_custom_call.1} parent=1 // pred_check
      _
    $region3: #{tpu_custom_call.1} parent=1 // pred_check_branch
      %11 = sbr.rel (0) target = $region5
    $region4: #{tpu_custom_call.1} parent=1 // pred_region
      %s13 = ssub.s32 128, 128
      %14 = vsyncadd [#allocation3], %s13
      %s16 = sshll.u32 [#allocation2], 4
      %s17 = int_to_ptr.vmem [resolvable:$true] %s16
      %19 = dma.hbm_to_vmem [thread:$0]  %s0, 128, %s17, [#allocation3]
    $region5: #{tpu_custom_call.1} parent=1 // pred_fallthru
      _
    // Predicated region
    $region6: #{tpu_custom_call.1} parent=1 // pred_check
      _
    $region7: #{tpu_custom_call.1} parent=1 // pred_check_branch
      %21 = sbr.rel (0) target = $region9
    $region8: #{tpu_custom_call.1} parent=1 // pred_region
      %s23 = ssub.s32 128, 128
      %24 = vsyncadd [#allocation6], %s23
      %s26 = sshll.u32 [#allocation5], 4
      %s27 = int_to_ptr.vmem [resolvable:$true] %s26
      %29 = dma.hbm_to_vmem [thread:$0]  %s1, 128, %s27, [#allocation6]
    $region9: #{tpu_custom_call.1} parent=1 // pred_fallthru
      _
    // Predicated region
    $region10: #{tpu_custom_call.1} parent=1 // pred_check
      _
    $region11: #{tpu_custom_call.1} parent=1 // pred_check_branch
      %31 = sbr.rel (0) target = $region13
    $region12: #{tpu_custom_call.1} parent=1 // pred_region
      %32 = dma.done [#allocation3], 128
    $region13: #{tpu_custom_call.1} parent=1 // pred_fallthru
      _
    // Predicated region
    $region14: #{tpu_custom_call.1} parent=1 // pred_check
      _
    $region15: #{tpu_custom_call.1} parent=1 // pred_check_branch
      %34 = sbr.rel (0) target = $region17
    $region16: #{tpu_custom_call.1} parent=1 // pred_region
      %35 = dma.done [#allocation6], 128
    $region17: #{tpu_custom_call.1} parent=1 // pred_fallthru
      _
    %v36 = vld [vmem:[#allocation2] sm:$0xff]
    %v37 = vld [vmem:[#allocation5] sm:$0xff]
    %vm38 = vcmask 261120
    %v39 = vsel %vm38, %v36, -inf
    %40 = vmax.xlane.f32.xlu0 %v39
    %v41 = vpop.xlane.xlu0 %40
    %v42 = vsub.f32 %v36, %v41
    %v43 = vmul.f32 %v42, 1.442695
    %v44 = vpow.pop %v43
    %v45 = vsel %vm38, %v44, 0.0
    %46 = vadd.xlane.f32.xlu0 %v45
    %v47 = vpop.xlane.xlu0 %46
    %v48 = vlog2.pop %v47
    %v49 = vmul.f32 %v48, 0.6931472
    %v50 = vlaneseq
    %v51 = vand.u32 %v50, 127
    %52 = vset.pattern.permute.xlu0 0
    %53 = vperm.xlu0 %52, %v37
    %v54 = vpop.permute.xlu0 %53
    %vm55 = vcmp.eq.s32.totalorder %v51, %v54
    %v56 = vsel %vm55, 0.903125, 0.003125
    %v57 = vmul.f32 %v42, %v56
    %v58 = vsel %vm38, %v57, 0.0
    %59 = vadd.xlane.f32.xlu0 %v58
    %v60 = vpop.xlane.xlu0 %59
    %v61 = vsub.f32 %v49, %v60
    %v62 = vlaneseq
    %v63 = vshrl.u32 %v62, 7
    %s64 = smul.u32 0, 8
    %v65 = vstv %s64
    %v66 = vadd.s32 %v65, %v63
    %vm67 = vcmp.lt.s32.totalorder %v66, 8
    %v68 = vsel %vm67, %v61, 0.0
    %vm69 = vcmask 7168
    %v70 = vsel %vm69, %v68, 0.0
    %71 = vadd.xlane.f32.xlu0 %v70
    %v72 = vpop.xlane.xlu0 %71
    %v73 = vrot.slane %v72, 4
    %v74 = vadd.f32 %v72, %v73
    %v75 = vrot.slane %v74, 2
    %v76 = vadd.f32 %v74, %v75
    %v77 = vrot.slane %v76, 1
    %v78 = vadd.f32 %v76, %v77
    %s79 = vtos %v78
    %v80 = vstv %s79
    %81 = vst [vmem:[#allocation7] sm:$0xff] %v80
    // Predicated region
    $region18: #{tpu_custom_call.1} parent=1 // pred_check
      _
    $region19: #{tpu_custom_call.1} parent=1 // pred_check_branch
      %83 = sbr.rel (0) target = $region21
    $region20: #{tpu_custom_call.1} parent=1 // pred_region
      %s85 = ssub.s32 128, 128
      %86 = vsyncadd [#allocation4], %s85
      %s88 = sshll.u32 [#allocation7], 4
      %s89 = int_to_ptr.vmem [resolvable:$true] %s88
      %91 = dma.vmem_to_hbm [thread:$0]  %s89, 128, %s2, [#allocation4]
    $region21: #{tpu_custom_call.1} parent=1 // pred_fallthru
      _
    // Predicated region
    $region22: #{tpu_custom_call.1} parent=1 // pred_check
      _
    $region23: #{tpu_custom_call.1} parent=1 // pred_check_branch
      %93 = sbr.rel (0) target = $region25
    $region24: #{tpu_custom_call.1} parent=1 // pred_region
      %94 = dma.done [#allocation4], 128
    $region25: #{tpu_custom_call.1} parent=1 // pred_fallthru
      _
    %95 = vsyncpa [#allocation3], 1
    %96 = vsyncpa [#allocation6], 1
    %97 = vsyncpa [#allocation4], 1

</llo_original>
